<compile_context>
chip_gen: v6e
topology: v6e:2x2x1
jax: 0.10.0
libtpu: 0.0.40
codegen_flags: <defaults>
</compile_context>

<pallas_src>
import jax
import jax.numpy as jnp
from jax.experimental import pallas as pl
from jax.experimental.pallas import tpu as pltpu


def fuse_kernel(x_ref, w1t_ref, w2t_ref, out_ref, out_sum_ref):
    # x_ref:      (B, C, HW)  batch of samples, spatial flattened on lanes
    # w1t_ref:    (C, R)      fc1 weight, pre-transposed (row-vector form)
    # w2t_ref:    (R, C)      fc2 weight, pre-transposed
    # out_ref:    (B, 1, HW)  channel-weighted sum per sample (lane-dense)
    # out_sum_ref:(B, 1, C)   pre-softmax logits per sample (lane-dense)
    x = x_ref[...]                               # (B, C, HW) f32
    b = x.shape[0]
    inv_hw = 1.0 / x.shape[2]

    # Global average / max pooling over spatial dims (AdaptiveAvg/MaxPool2d(1)).
    avg = jnp.sum(x, axis=2) * inv_hw            # (B, C)
    mx = jnp.max(x, axis=2)                      # (B, C)

    # fc1 -> relu -> fc2; avg & max paths fused into a single (2B, C) matmul pair.
    stats = jnp.concatenate([avg, mx], axis=0)                       # (2B, C)
    h = jnp.maximum(
        jnp.dot(stats, w1t_ref[...], preferred_element_type=jnp.float32),
        0.0)                                                         # (2B, R)
    logits = jnp.dot(h, w2t_ref[...],
                     preferred_element_type=jnp.float32)             # (2B, C)
    out_sum = logits[:b] + logits[b:]                                # (B, C)

    # Softmax over the channel axis (last / lane axis here). Exact divide to
    # match the PyTorch reference bit-for-bit within f32 rounding.
    m = jnp.max(out_sum, axis=-1, keepdims=True)
    e = jnp.exp(out_sum - m)
    denom = jnp.sum(e, axis=-1, keepdims=True)
    weight = e / denom                                               # (B, C)

    # weight.mul(x) summed over channels, as an MXU batched matmul:
    # (B,1,C) @ (B,C,HW) -> (B,1,HW), lane-dense result.
    fused = jnp.einsum("bkc,bch->bkh", weight[:, None, :], x,
                       preferred_element_type=jnp.float32)           # (B,1,HW)

    out_ref[...] = fused
    out_sum_ref[...] = out_sum[:, None, :]


def fuse_layer(x, w1, w2, *, target_block_bytes=4 * 1024 * 1024):
    """x: (N, C, H, W) f32, w1: (R, C), w2: (C, R). Returns (out, out_sum)."""
    N, C, H, W = x.shape
    R = w1.shape[0]
    HW = H * W

    x2 = x.reshape(N, C, HW).astype(jnp.float32)
    w1t = jnp.asarray(w1, jnp.float32).T         # (C, R)
    w2t = jnp.asarray(w2, jnp.float32).T         # (R, C)

    # Batch B samples per grid step so the per-step block is ~target bytes.
    per_sample = C * HW * 4
    B = int(max(1, min(N, target_block_bytes // max(per_sample, 1))))
    num_blocks = (N + B - 1) // B
    N_pad = num_blocks * B
    if N_pad != N:
        # Zero samples are harmless: pooled stats 0, softmax uniform, out 0;
        # padded rows are sliced away below.
        x2 = jnp.pad(x2, ((0, N_pad - N), (0, 0), (0, 0)))

    # Scoped-VMEM budget: double-buffered input/output blocks + weights + slack.
    x_block = B * C * HW * 4
    out_block = B * HW * 4
    sum_block = B * C * 4
    needed = 2 * (x_block + out_block + sum_block) + 4 * C * R * 4 + (4 << 20)
    vmem_limit = int(min(max(needed, 16 << 20), 48 << 20))

    out_flat, out_sum_flat = pl.pallas_call(
        fuse_kernel,
        out_shape=(
            jax.ShapeDtypeStruct((N_pad, 1, HW), jnp.float32),
            jax.ShapeDtypeStruct((N_pad, 1, C), jnp.float32),
        ),
        grid=(num_blocks,),
        in_specs=[
            pl.BlockSpec((B, C, HW), lambda n: (n, 0, 0)),
            pl.BlockSpec((C, R), lambda n: (0, 0)),
            pl.BlockSpec((R, C), lambda n: (0, 0)),
        ],
        out_specs=(
            pl.BlockSpec((B, 1, HW), lambda n: (n, 0, 0)),
            pl.BlockSpec((B, 1, C), lambda n: (n, 0, 0)),
        ),
        compiler_params=pltpu.CompilerParams(
            dimension_semantics=("parallel",),
            vmem_limit_bytes=vmem_limit,
        ),
    )(x2, w1t, w2t)

    out = out_flat[:N, 0, :].reshape(N, H, W)[None]        # (1, N, H, W)
    out_sum = out_sum_flat[:N, 0, :].reshape(N, C, 1, 1)   # (N, C, 1, 1)
    return out, out_sum


def fuse_layer_ref(x, w1, w2):
    """Pure-JAX reference mirroring the PyTorch forward."""
    N, C, H, W = x.shape
    avg = jnp.mean(x, axis=(2, 3))               # (N, C)
    mx = jnp.max(x, axis=(2, 3))                 # (N, C)
    avg_out = jnp.maximum(avg @ w1.T, 0.0) @ w2.T
    max_out = jnp.maximum(mx @ w1.T, 0.0) @ w2.T
    out_sum = avg_out + max_out                  # (N, C)
    weight = jax.nn.softmax(out_sum, axis=1)     # (N, C)
    out = jnp.sum(weight[:, :, None, None] * x, axis=1)[None]   # (1, N, H, W)
    return out, out_sum.reshape(N, C, 1, 1)


if __name__ == "__main__":
    in_planes, dim_reduced = 5, 3
    N, H, W = 2, 16, 16

    key = jax.random.PRNGKey(0)
    kx, k1, k2 = jax.random.split(key, 3)
    x = jax.random.normal(kx, (N, in_planes, H, W), dtype=jnp.float32)
    # Conv2d weights (1x1, no bias): normal(0, 0.01), squeezed to 2-D matrices.
    w1 = 0.01 * jax.random.normal(k1, (dim_reduced, in_planes), dtype=jnp.float32)
    w2 = 0.01 * jax.random.normal(k2, (in_planes, dim_reduced), dtype=jnp.float32)

    out, out_sum = fuse_layer(x, w1, w2)
    jax.block_until_ready((out, out_sum))

    out_r, out_sum_r = fuse_layer_ref(x, w1, w2)
    assert out.shape == (1, N, H, W) and out_sum.shape == (N, in_planes, 1, 1)
    assert jnp.allclose(out, out_r, atol=1e-5, rtol=1e-5)
    assert jnp.allclose(out_sum, out_sum_r, atol=1e-5, rtol=1e-5)

    print("KERNEL_OK")
</pallas_src>

<mosaic_0001>
module attributes {stable_mosaic.version = 11 : i64} {
  func.func @fuse_kernel(%arg0: i32, %arg1: memref<2x5x256xf32, #tpu.memory_space<vmem>>, %arg2: memref<5x3xf32, #tpu.memory_space<vmem>>, %arg3: memref<3x5xf32, #tpu.memory_space<vmem>>, %arg4: memref<2x1x256xf32, #tpu.memory_space<vmem>>, %arg5: memref<2x1x5xf32, #tpu.memory_space<vmem>>) attributes {dimension_semantics = [#tpu.dimension_semantics<parallel>], iteration_bounds = array<i64: 1>, scalar_prefetch = 0 : i64, scratch_operands = 0 : i64, tpu.core_type = #tpu.core_type<tc>, window_params = [{transform_indices = @transform_0, window_bounds = array<i64: 2, 5, 256>}, {pipeline_mode = #tpu.pipeline_mode<synchronous>, transform_indices = @transform_1, window_bounds = array<i64: 5, 3>}, {pipeline_mode = #tpu.pipeline_mode<synchronous>, transform_indices = @transform_2, window_bounds = array<i64: 3, 5>}, {transform_indices = @transform_3, window_bounds = array<i64: 2, 1, 256>}, {transform_indices = @transform_4, window_bounds = array<i64: 2, 1, 5>}]} {
    %c0 = arith.constant 0 : index
    %c0_0 = arith.constant 0 : index
    %c0_1 = arith.constant 0 : index
    %0 = vector.load %arg1[%c0, %c0_0, %c0_1] : memref<2x5x256xf32, #tpu.memory_space<vmem>>, vector<2x5x256xf32>
    %cst = arith.constant dense<0.000000e+00> : vector<2x5xf32>
    %1 = vector.multi_reduction <add>, %0, %cst [2] : vector<2x5x256xf32> to vector<2x5xf32>
    %cst_2 = arith.constant 3.906250e-03 : f32
    %2 = vector.broadcast %cst_2 : f32 to vector<2x5xf32>
    %3 = arith.mulf %1, %2 : vector<2x5xf32>
    %cst_3 = arith.constant dense<0xFF800000> : vector<2x5xf32>
    %4 = vector.multi_reduction <maximumf>, %0, %cst_3 [2] : vector<2x5x256xf32> to vector<2x5xf32>
    %5 = tpu.concatenate %3, %4 in 0 : vector<2x5xf32>, vector<2x5xf32> -> vector<4x5xf32>
    %c0_4 = arith.constant 0 : index
    %c0_5 = arith.constant 0 : index
    %6 = vector.load %arg2[%c0_4, %c0_5] : memref<5x3xf32, #tpu.memory_space<vmem>>, vector<5x3xf32>
    %cst_6 = arith.constant dense<0.000000e+00> : vector<4x3xf32>
    %7 = tpu.matmul %5, %6, %cst_6 {dimension_numbers = #tpu.dot_dimension_numbers<[1], [0], [0], [1], [0, 0, 1, 1], [], []>} : vector<4x5xf32>, vector<5x3xf32>, vector<4x3xf32> -> vector<4x3xf32>
    %cst_7 = arith.constant 0.000000e+00 : f32
    %8 = vector.broadcast %cst_7 : f32 to vector<4x3xf32>
    %9 = arith.maximumf %7, %8 : vector<4x3xf32>
    %c0_8 = arith.constant 0 : index
    %c0_9 = arith.constant 0 : index
    %10 = vector.load %arg3[%c0_8, %c0_9] : memref<3x5xf32, #tpu.memory_space<vmem>>, vector<3x5xf32>
    %cst_10 = arith.constant dense<0.000000e+00> : vector<4x5xf32>
    %11 = tpu.matmul %9, %10, %cst_10 {dimension_numbers = #tpu.dot_dimension_numbers<[1], [0], [0], [1], [0, 0, 1, 1], [], []>} : vector<4x3xf32>, vector<3x5xf32>, vector<4x5xf32> -> vector<4x5xf32>
    %12 = vector.extract_strided_slice %11 {offsets = [0, 0], sizes = [2, 5], strides = [1, 1]} : vector<4x5xf32> to vector<2x5xf32>
    %13 = vector.extract_strided_slice %11 {offsets = [2, 0], sizes = [2, 5], strides = [1, 1]} : vector<4x5xf32> to vector<2x5xf32>
    %14 = arith.addf %12, %13 : vector<2x5xf32>
    %cst_11 = arith.constant dense<0xFF800000> : vector<2xf32>
    %15 = vector.multi_reduction <maximumf>, %14, %cst_11 [1] : vector<2x5xf32> to vector<2xf32>
    %16 = vector.shape_cast %15 : vector<2xf32> to vector<2x1xf32>
    %17 = vector.broadcast %16 : vector<2x1xf32> to vector<2x5xf32>
    %18 = arith.subf %14, %17 : vector<2x5xf32>
    %19 = math.exp %18 : vector<2x5xf32>
    %cst_12 = arith.constant dense<0.000000e+00> : vector<2xf32>
    %20 = vector.multi_reduction <add>, %19, %cst_12 [1] : vector<2x5xf32> to vector<2xf32>
    %21 = vector.shape_cast %20 : vector<2xf32> to vector<2x1xf32>
    %22 = vector.broadcast %21 : vector<2x1xf32> to vector<2x5xf32>
    %23 = arith.divf %19, %22 : vector<2x5xf32>
    %24 = vector.shape_cast %23 : vector<2x5xf32> to vector<2x1x5xf32>
    "tpu.trace_start"() <{level = 10 : i32, message = "bkc,bch->bkh"}> : () -> ()
    %cst_13 = arith.constant dense<0.000000e+00> : vector<2x1x256xf32>
    %25 = tpu.matmul %24, %0, %cst_13 {dimension_numbers = #tpu.dot_dimension_numbers<[2], [1], [1], [2], [0, 0, 0, 1, 1, 2], [0], [0]>} : vector<2x1x5xf32>, vector<2x5x256xf32>, vector<2x1x256xf32> -> vector<2x1x256xf32>
    "tpu.trace_stop"() : () -> ()
    %c0_14 = arith.constant 0 : index
    %c0_15 = arith.constant 0 : index
    %c0_16 = arith.constant 0 : index
    %26 = vector.load %arg4[%c0_14, %c0_15, %c0_16] : memref<2x1x256xf32, #tpu.memory_space<vmem>>, vector<2x1x256xf32>
    tpu.vector_store %arg4[%c0_14, %c0_15, %c0_16], %25 {strides = array<i32>} : memref<2x1x256xf32, #tpu.memory_space<vmem>>, vector<2x1x256xf32>,
    %27 = vector.shape_cast %14 : vector<2x5xf32> to vector<2x1x5xf32>
    %c0_17 = arith.constant 0 : index
    %c0_18 = arith.constant 0 : index
    %c0_19 = arith.constant 0 : index
    %28 = vector.load %arg5[%c0_17, %c0_18, %c0_19] : memref<2x1x5xf32, #tpu.memory_space<vmem>>, vector<2x1x5xf32>
    tpu.vector_store %arg5[%c0_17, %c0_18, %c0_19], %27 {strides = array<i32>} : memref<2x1x5xf32, #tpu.memory_space<vmem>>, vector<2x1x5xf32>,
    return
  }
  func.func @transform_0(%arg0: i32) -> (i32, i32, i32) {
    %c0_i32 = arith.constant 0 : i32
    %c0_i32_0 = arith.constant 0 : i32
    %c0_i32_1 = arith.constant 0 : i32
    return %arg0, %c0_i32, %c0_i32_0 : i32, i32, i32
  }
  func.func @transform_1(%arg0: i32) -> (i32, i32) {
    %c0_i32 = arith.constant 0 : i32
    %c0_i32_0 = arith.constant 0 : i32
    %c0_i32_1 = arith.constant 0 : i32
    return %c0_i32, %c0_i32_0 : i32, i32
  }
  func.func @transform_2(%arg0: i32) -> (i32, i32) {
    %c0_i32 = arith.constant 0 : i32
    %c0_i32_0 = arith.constant 0 : i32
    %c0_i32_1 = arith.constant 0 : i32
    return %c0_i32, %c0_i32_0 : i32, i32
  }
  func.func @transform_3(%arg0: i32) -> (i32, i32, i32) {
    %c0_i32 = arith.constant 0 : i32
    %c0_i32_0 = arith.constant 0 : i32
    %c0_i32_1 = arith.constant 0 : i32
    return %arg0, %c0_i32, %c0_i32_0 : i32, i32, i32
  }
  func.func @transform_4(%arg0: i32) -> (i32, i32, i32) {
    %c0_i32 = arith.constant 0 : i32
    %c0_i32_0 = arith.constant 0 : i32
    %c0_i32_1 = arith.constant 0 : i32
    return %arg0, %c0_i32, %c0_i32_0 : i32, i32, i32
  }
}

</mosaic_0001>

<llo_original>
// kernel: tpu_custom_call.1
$region0: #{tpu_custom_call.1}
  #allocation0 [shape = 'u32[]', space=smem, size = 0x4, offset = 0x4, fixed_abs, tag = 'smem constant byte address 0x4 - core index']
  #allocation1 [shape = 'u32[144,128]{1,0:T(1,128)}', space=vmem, size = 0x12000, scoped, tag = 'internal scratch']
  %s0 = inlined_call_operand.vmem [shape: f32[2,5,256], index: 0, kind: input, shape index: {}]
  %s1 = inlined_call_operand.vmem [shape: f32[5,3], index: 1, kind: input, shape index: {}]
  %s2 = inlined_call_operand.vmem [shape: f32[3,5], index: 2, kind: input, shape index: {}]
  %s3 = inlined_call_operand.hbm [shape: f32[2,1,256], index: 3, kind: output, shape index: {0}]
  %s4 = inlined_call_operand.hbm [shape: f32[2,1,5], index: 4, kind: output, shape index: {1}]
  %5 = xla_tuple %s3, %s4
  %s6 = sld [smem:[#allocation0]]
  $region30: #{tpu_custom_call.1} parent=0
    _
  %s8 = ssub.s32 1, %s6
  %s9 = scalar_select 0, %s8, %s6
  $region1: #{tpu_custom_call.1} parent=0
    #allocation2 [shape = 'u8[2048]{0}', space=vmem, size = 0x800, scoped, tag = 'output window, operand 0, single buffered']
    #allocation3 [shape = 's32[1]{0}', space=sflag, size = 0x4, scoped, tag = 'scoped memory for tpu_custom_call.1']
    #allocation4 [shape = 'u8[1024]{0}', space=vmem, size = 0x400, scoped, tag = 'output window, operand 1, single buffered']
    #allocation5 [shape = 's32[1]{0}', space=sflag, size = 0x4, scoped, tag = 'scoped memory for tpu_custom_call.1']
    %10 = vsyncpa [#allocation3], 0
    %11 = vsyncpa [#allocation5], 0
    // Predicated region
    $region2: #{tpu_custom_call.1} parent=1 // pred_check
      _
    $region3: #{tpu_custom_call.1} parent=1 // pred_check_branch
      %13 = sbr.rel (0) target = $region5
    $region4: #{tpu_custom_call.1} parent=1 // pred_region
      _
    $region5: #{tpu_custom_call.1} parent=1 // pred_fallthru
      _
    // Predicated region
    $region6: #{tpu_custom_call.1} parent=1 // pred_check
      _
    $region7: #{tpu_custom_call.1} parent=1 // pred_check_branch
      %15 = sbr.rel (0) target = $region9
    $region8: #{tpu_custom_call.1} parent=1 // pred_region
      _
    $region9: #{tpu_custom_call.1} parent=1 // pred_fallthru
      _
    // Predicated region
    $region10: #{tpu_custom_call.1} parent=1 // pred_check
      _
    $region11: #{tpu_custom_call.1} parent=1 // pred_check_branch
      %17 = sbr.rel (0) target = $region13
    $region12: #{tpu_custom_call.1} parent=1 // pred_region
      _
    $region13: #{tpu_custom_call.1} parent=1 // pred_fallthru
      _
    %v18 = vld [vmem:[%s0] sm:$0x1f]
    %v19 = vld [vmem:[%s0 + $0x8] sm:$0x1f]
    %v20 = vld [vmem:[%s0 + $0x10] sm:$0x1f]
    %v21 = vld [vmem:[%s0 + $0x18] sm:$0x1f]
    %vm22 = vcmask 1044480
    %v23 = vsel %vm22, %v18, 0.0
    %v24 = vsel %vm22, %v19, 0.0
    %v25 = vadd.f32 %v23, %v24
    %26 = vadd.xlane.f32.xlu0 %v25
    %v27 = vpop.xlane.xlu0 %26
    %v28 = vsel %vm22, %v20, 0.0
    %v29 = vsel %vm22, %v21, 0.0
    %v30 = vadd.f32 %v28, %v29
    %31 = vadd.xlane.f32.xlu0 %v30
    %v32 = vpop.xlane.xlu0 %31
    %v33 = vmul.f32 %v27, 0.00390625
    %v34 = vmul.f32 %v32, 0.00390625
    %v35 = vsel %vm22, %v18, -inf
    %v36 = vsel %vm22, %v19, -inf
    %v37 = vmax.f32 %v35, %v36
    %38 = vmax.xlane.f32.xlu0 %v37
    %v39 = vpop.xlane.xlu0 %38
    %v40 = vsel %vm22, %v20, -inf
    %v41 = vsel %vm22, %v21, -inf
    %v42 = vmax.f32 %v40, %v41
    %43 = vmax.xlane.f32.xlu0 %v42
    %v44 = vpop.xlane.xlu0 %43
    %v47 = vlaneseq
    %v48 = vand.u32 %v47, 127
    %v49 = vlaneseq
    %v50 = vshrl.u32 %v49, 7
    %v51 = vsub.s32 %v48, %v50
    %v52 = vrot.slane %v33, %v51
    %v53 = vlaneseq
    %v54 = vshrl.u32 %v53, 7
    %v55 = vsub.s32 %v48, %v54
    %v56 = vrot.slane %v34, %v55
    %vm57 = vcmask 1041409
    %v58 = vsel %vm57, %v56, %v52
    %v62 = vlaneseq
    %v63 = vshrl.u32 %v62, 7
    %v64 = vsub.s32 %v48, %v63
    %v65 = vrot.slane %v39, %v64
    %v66 = vlaneseq
    %v67 = vshrl.u32 %v66, 7
    %v68 = vsub.s32 %v48, %v67
    %v69 = vrot.slane %v44, %v68
    %vm70 = vcmask 1043459
    %v71 = vsel %vm70, %v69, %v65
    %vm73 = vcmask 1041408
    %v74 = vsel %vm73, %v58, %v71
    %v75 = vld [vmem:[%s1] sm:$0x1f]
    %vm76 = vcmask 39936
    %v78 = vsel %vm76, %v74, 0
    %v81 = vsel %vm22, %v75, 0
    %83 = vmatprep.subr.mxu0 0.0
    %84 = vmatpush1.msra.mxu0 0.0
    %85 = vmatprep.subr.mxu0 0.0
    %86 = vmatpush1.msra.mxu0 0.0
    %87 = vmatprep.subr.mxu0 0.0
    %88 = vmatpush1.msra.mxu0 0.0
    %89 = vmatprep.subr.mxu0 0.0
    %90 = vmatpush1.msra.mxu0 0.0
    %91 = vmatprep.subr.mxu0 0.0
    %92 = vmatpush1.msra.mxu0 0.0
    %93 = vmatprep.subr.mxu0 0.0
    %94 = vmatpush1.msra.mxu0 0.0
    %95 = vmatprep.subr.mxu0 0.0
    %96 = vmatpush1.msra.mxu0 0.0
    %97 = vmatprep.subr.mxu0 0.0
    %98 = vmatpush1.msra.mxu0 0.0
    %99 = vmatprep.subr.mxu0 0.0
    %100 = vmatpush1.msra.mxu0 0.0
    %101 = vmatprep.subr.mxu0 0.0
    %102 = vmatpush1.msra.mxu0 0.0
    %103 = vmatprep.subr.mxu0 0.0
    %104 = vmatpush1.msra.mxu0 0.0
    %105 = vmatprep.subr.mxu0 0.0
    %106 = vmatpush1.msra.mxu0 0.0
    %107 = vmatprep.subr.mxu0 0.0
    %108 = vmatpush1.msra.mxu0 0.0
    %109 = vmatprep.subr.mxu0 0.0
    %110 = vmatpush1.msra.mxu0 0.0
    %111 = vmatprep.subr.mxu0 0.0
    %112 = vmatpush1.msra.mxu0 0.0
    %113 = vmatprep.subr.mxu0 0.0
    %114 = vmatpush1.msra.mxu0 %v81
    %115 = vmatprep.subr.mxu0 0.0
    %116 = vmatpush2.msra.mxu0 0.0
    %117 = vmatprep.subr.mxu0 0.0
    %118 = vmatpush2.msra.mxu0 0.0
    %119 = vmatprep.subr.mxu0 0.0
    %120 = vmatpush2.msra.mxu0 0.0
    %121 = vmatprep.subr.mxu0 0.0
    %122 = vmatpush2.msra.mxu0 0.0
    %123 = vmatprep.subr.mxu0 0.0
    %124 = vmatpush2.msra.mxu0 0.0
    %125 = vmatprep.subr.mxu0 0.0
    %126 = vmatpush2.msra.mxu0 0.0
    %127 = vmatprep.subr.mxu0 0.0
    %128 = vmatpush2.msra.mxu0 0.0
    %129 = vmatprep.subr.mxu0 0.0
    %130 = vmatpush2.msra.mxu0 0.0
    %131 = vmatprep.subr.mxu0 0.0
    %132 = vmatpush2.msra.mxu0 0.0
    %133 = vmatprep.subr.mxu0 0.0
    %134 = vmatpush2.msra.mxu0 0.0
    %135 = vmatprep.subr.mxu0 0.0
    %136 = vmatpush2.msra.mxu0 0.0
    %137 = vmatprep.subr.mxu0 0.0
    %138 = vmatpush2.msra.mxu0 0.0
    %139 = vmatprep.subr.mxu0 0.0
    %140 = vmatpush2.msra.mxu0 0.0
    %141 = vmatprep.subr.mxu0 0.0
    %142 = vmatpush2.msra.mxu0 0.0
    %143 = vmatprep.subr.mxu0 0.0
    %144 = vmatpush2.msra.mxu0 0.0
    %145 = vmatprep.subr.mxu0 0.0
    %146 = vmatpush2.msra.mxu0 0.0
    %147 = vmatprep.mubr.f32.mxu0 0.0
    %148 = vmatmul.mubr.f32.gmra.mxu0 %v78
    %v149 = vpop.f32.mrf.mxu0
    %v150 = vadd.f32 0.0, %v149
    %v151 = vpop.f32.mrf.mxu0
    %152 = vdwg.mxu0
    %v153 = vmax.f32 %v150, 0.0
    %v154 = vld [vmem:[%s2] sm:$0x7]
    %vm155 = vcmask 23552
    %v157 = vsel %vm155, %v153, 0
    %vm159 = vcmask 1042432
    %v161 = vsel %vm159, %v154, 0
    %163 = vmatprep.subr.mxu0 0.0
    %164 = vmatpush1.msra.mxu0 0.0
    %165 = vmatprep.subr.mxu0 0.0
    %166 = vmatpush1.msra.mxu0 0.0
    %167 = vmatprep.subr.mxu0 0.0
    %168 = vmatpush1.msra.mxu0 0.0
    %169 = vmatprep.subr.mxu0 0.0
    %170 = vmatpush1.msra.mxu0 0.0
    %171 = vmatprep.subr.mxu0 0.0
    %172 = vmatpush1.msra.mxu0 0.0
    %173 = vmatprep.subr.mxu0 0.0
    %174 = vmatpush1.msra.mxu0 0.0
    %175 = vmatprep.subr.mxu0 0.0
    %176 = vmatpush1.msra.mxu0 0.0
    %177 = vmatprep.subr.mxu0 0.0
    %178 = vmatpush1.msra.mxu0 0.0
    %179 = vmatprep.subr.mxu0 0.0
    %180 = vmatpush1.msra.mxu0 0.0
    %181 = vmatprep.subr.mxu0 0.0
    %182 = vmatpush1.msra.mxu0 0.0
    %183 = vmatprep.subr.mxu0 0.0
    %184 = vmatpush1.msra.mxu0 0.0
    %185 = vmatprep.subr.mxu0 0.0
    %186 = vmatpush1.msra.mxu0 0.0
    %187 = vmatprep.subr.mxu0 0.0
    %188 = vmatpush1.msra.mxu0 0.0
    %189 = vmatprep.subr.mxu0 0.0
    %190 = vmatpush1.msra.mxu0 0.0
    %191 = vmatprep.subr.mxu0 0.0
    %192 = vmatpush1.msra.mxu0 0.0
    %193 = vmatprep.subr.mxu0 0.0
    %194 = vmatpush1.msra.mxu0 %v161
    %195 = vmatprep.subr.mxu0 0.0
    %196 = vmatpush2.msra.mxu0 0.0
    %197 = vmatprep.subr.mxu0 0.0
    %198 = vmatpush2.msra.mxu0 0.0
    %199 = vmatprep.subr.mxu0 0.0
    %200 = vmatpush2.msra.mxu0 0.0
    %201 = vmatprep.subr.mxu0 0.0
    %202 = vmatpush2.msra.mxu0 0.0
    %203 = vmatprep.subr.mxu0 0.0
    %204 = vmatpush2.msra.mxu0 0.0
    %205 = vmatprep.subr.mxu0 0.0
    %206 = vmatpush2.msra.mxu0 0.0
    %207 = vmatprep.subr.mxu0 0.0
    %208 = vmatpush2.msra.mxu0 0.0
    %209 = vmatprep.subr.mxu0 0.0
    %210 = vmatpush2.msra.mxu0 0.0
    %211 = vmatprep.subr.mxu0 0.0
    %212 = vmatpush2.msra.mxu0 0.0
    %213 = vmatprep.subr.mxu0 0.0
    %214 = vmatpush2.msra.mxu0 0.0
    %215 = vmatprep.subr.mxu0 0.0
    %216 = vmatpush2.msra.mxu0 0.0
    %217 = vmatprep.subr.mxu0 0.0
    %218 = vmatpush2.msra.mxu0 0.0
    %219 = vmatprep.subr.mxu0 0.0
    %220 = vmatpush2.msra.mxu0 0.0
    %221 = vmatprep.subr.mxu0 0.0
    %222 = vmatpush2.msra.mxu0 0.0
    %223 = vmatprep.subr.mxu0 0.0
    %224 = vmatpush2.msra.mxu0 0.0
    %225 = vmatprep.subr.mxu0 0.0
    %226 = vmatpush2.msra.mxu0 0.0
    %227 = vmatprep.mubr.f32.mxu0 0.0
    %228 = vmatmul.mubr.f32.gmra.mxu0 %v157
    %v229 = vpop.f32.mrf.mxu0
    %v230 = vadd.f32 0.0, %v229
    %v231 = vpop.f32.mrf.mxu0
    %232 = vdwg.mxu0
    %v234 = vrot.slane %v230, 2
    %v236 = vadd.f32 %v230, %v234
    %vm237 = vcmask 33792
    %v238 = vsel %vm237, %v236, -inf
    %239 = vmax.xlane.f32.xlu0 %v238
    %v240 = vpop.xlane.xlu0 %239
    %v241 = vsub.f32 %v236, %v240
    %v242 = vmul.f32 %v241, 1.442695
    %v243 = vpow.pop %v242
    %v244 = vsel %vm237, %v243, 0.0
    %245 = vadd.xlane.f32.xlu0 %v244
    %v246 = vpop.xlane.xlu0 %245
    %v247 = vrcp.pop %v246
    %v248 = vmul.f32 %v243, %v247
    %v251 = vunpack.c.l.s4 1966171168
    %v252 = vunpack.c.0.s8 %v251
    %v253 = vlaneseq
    %v254 = vshrl.u32 %v253, 7
    %v255 = vsub.s32 %v252, %v254
    %v256 = vrot.slane %v248, %v255
    %v257 = vcombine.high %v256, %v256
    %v259 = vunpack.c.l.s4 1966171168
    %v260 = vunpack.c.0.s8 %v259
    %v261 = vlaneseq
    %v262 = vshrl.u32 %v261, 7
    %v263 = vsub.s32 %v260, %v262
    %v264 = vrot.slane %v256, %v263
    %v266 = vunpack.c.l.s4 1966171168
    %v267 = vunpack.c.0.s8 %v266
    %v268 = vlaneseq
    %v269 = vshrl.u32 %v268, 7
    %v270 = vsub.s32 %v267, %v269
    %v271 = vrot.slane %v257, %v270
    %v272 = vsel %vm76, %v264, 0
    %v275 = vsel %vm22, %v18, 0
    %v278 = vsel %vm22, %v19, 0
    %280 = vmatprep.subr.mxu0 0.0
    %281 = vmatpush1.msra.mxu0 0.0
    %282 = vmatprep.subr.mxu0 0.0
    %283 = vmatpush1.msra.mxu0 0.0
    %284 = vmatprep.subr.mxu0 0.0
    %285 = vmatpush1.msra.mxu0 0.0
    %286 = vmatprep.subr.mxu0 0.0
    %287 = vmatpush1.msra.mxu0 0.0
    %288 = vmatprep.subr.mxu0 0.0
    %289 = vmatpush1.msra.mxu0 0.0
    %290 = vmatprep.subr.mxu0 0.0
    %291 = vmatpush1.msra.mxu0 0.0
    %292 = vmatprep.subr.mxu0 0.0
    %293 = vmatpush1.msra.mxu0 0.0
    %294 = vmatprep.subr.mxu0 0.0
    %295 = vmatpush1.msra.mxu0 0.0
    %296 = vmatprep.subr.mxu0 0.0
    %297 = vmatpush1.msra.mxu0 0.0
    %298 = vmatprep.subr.mxu0 0.0
    %299 = vmatpush1.msra.mxu0 0.0
    %300 = vmatprep.subr.mxu0 0.0
    %301 = vmatpush1.msra.mxu0 0.0
    %302 = vmatprep.subr.mxu0 0.0
    %303 = vmatpush1.msra.mxu0 0.0
    %304 = vmatprep.subr.mxu0 0.0
    %305 = vmatpush1.msra.mxu0 0.0
    %306 = vmatprep.subr.mxu0 0.0
    %307 = vmatpush1.msra.mxu0 0.0
    %308 = vmatprep.subr.mxu0 0.0
    %309 = vmatpush1.msra.mxu0 0.0
    %310 = vmatprep.subr.mxu0 %v278
    %311 = vmatpush1.msra.mxu0 %v275
    %312 = vmatprep.subr.mxu0 0.0
    %313 = vmatpush2.msra.mxu0 0.0
    %314 = vmatprep.subr.mxu0 0.0
    %315 = vmatpush2.msra.mxu0 0.0
    %316 = vmatprep.subr.mxu0 0.0
    %317 = vmatpush2.msra.mxu0 0.0
    %318 = vmatprep.subr.mxu0 0.0
    %319 = vmatpush2.msra.mxu0 0.0
    %320 = vmatprep.subr.mxu0 0.0
    %321 = vmatpush2.msra.mxu0 0.0
    %322 = vmatprep.subr.mxu0 0.0
    %323 = vmatpush2.msra.mxu0 0.0
    %324 = vmatprep.subr.mxu0 0.0
    %325 = vmatpush2.msra.mxu0 0.0
    %326 = vmatprep.subr.mxu0 0.0
    %327 = vmatpush2.msra.mxu0 0.0
    %328 = vmatprep.subr.mxu0 0.0
    %329 = vmatpush2.msra.mxu0 0.0
    %330 = vmatprep.subr.mxu0 0.0
    %331 = vmatpush2.msra.mxu0 0.0
    %332 = vmatprep.subr.mxu0 0.0
    %333 = vmatpush2.msra.mxu0 0.0
    %334 = vmatprep.subr.mxu0 0.0
    %335 = vmatpush2.msra.mxu0 0.0
    %336 = vmatprep.subr.mxu0 0.0
    %337 = vmatpush2.msra.mxu0 0.0
    %338 = vmatprep.subr.mxu0 0.0
    %339 = vmatpush2.msra.mxu0 0.0
    %340 = vmatprep.subr.mxu0 0.0
    %341 = vmatpush2.msra.mxu0 0.0
    %342 = vmatprep.subr.mxu0 0.0
    %343 = vmatpush2.msra.mxu0 0.0
    %344 = vmatprep.mubr.f32.mxu0 0.0
    %345 = vmatmul.mubr.f32.gmra.mxu0 %v272
    %v346 = vpop.f32.mrf.mxu0
    %v347 = vadd.f32 0.0, %v346
    %v348 = vpop.f32.mrf.mxu0
    %v349 = vadd.f32 0.0, %v348
    %350 = vdwg.mxu0
    %v351 = vsel %vm76, %v271, 0
    %v354 = vsel %vm22, %v20, 0
    %v357 = vsel %vm22, %v21, 0
    %359 = vmatprep.subr.mxu0 0.0
    %360 = vmatpush1.msra.mxu0 0.0
    %361 = vmatprep.subr.mxu0 0.0
    %362 = vmatpush1.msra.mxu0 0.0
    %363 = vmatprep.subr.mxu0 0.0
    %364 = vmatpush1.msra.mxu0 0.0
    %365 = vmatprep.subr.mxu0 0.0
    %366 = vmatpush1.msra.mxu0 0.0
    %367 = vmatprep.subr.mxu0 0.0
    %368 = vmatpush1.msra.mxu0 0.0
    %369 = vmatprep.subr.mxu0 0.0
    %370 = vmatpush1.msra.mxu0 0.0
    %371 = vmatprep.subr.mxu0 0.0
    %372 = vmatpush1.msra.mxu0 0.0
    %373 = vmatprep.subr.mxu0 0.0
    %374 = vmatpush1.msra.mxu0 0.0
    %375 = vmatprep.subr.mxu0 0.0
    %376 = vmatpush1.msra.mxu0 0.0
    %377 = vmatprep.subr.mxu0 0.0
    %378 = vmatpush1.msra.mxu0 0.0
    %379 = vmatprep.subr.mxu0 0.0
    %380 = vmatpush1.msra.mxu0 0.0
    %381 = vmatprep.subr.mxu0 0.0
    %382 = vmatpush1.msra.mxu0 0.0
    %383 = vmatprep.subr.mxu0 0.0
    %384 = vmatpush1.msra.mxu0 0.0
    %385 = vmatprep.subr.mxu0 0.0
    %386 = vmatpush1.msra.mxu0 0.0
    %387 = vmatprep.subr.mxu0 0.0
    %388 = vmatpush1.msra.mxu0 0.0
    %389 = vmatprep.subr.mxu0 %v357
    %390 = vmatpush1.msra.mxu0 %v354
    %391 = vmatprep.subr.mxu0 0.0
    %392 = vmatpush2.msra.mxu0 0.0
    %393 = vmatprep.subr.mxu0 0.0
    %394 = vmatpush2.msra.mxu0 0.0
    %395 = vmatprep.subr.mxu0 0.0
    %396 = vmatpush2.msra.mxu0 0.0
    %397 = vmatprep.subr.mxu0 0.0
    %398 = vmatpush2.msra.mxu0 0.0
    %399 = vmatprep.subr.mxu0 0.0
    %400 = vmatpush2.msra.mxu0 0.0
    %401 = vmatprep.subr.mxu0 0.0
    %402 = vmatpush2.msra.mxu0 0.0
    %403 = vmatprep.subr.mxu0 0.0
    %404 = vmatpush2.msra.mxu0 0.0
    %405 = vmatprep.subr.mxu0 0.0
    %406 = vmatpush2.msra.mxu0 0.0
    %407 = vmatprep.subr.mxu0 0.0
    %408 = vmatpush2.msra.mxu0 0.0
    %409 = vmatprep.subr.mxu0 0.0
    %410 = vmatpush2.msra.mxu0 0.0
    %411 = vmatprep.subr.mxu0 0.0
    %412 = vmatpush2.msra.mxu0 0.0
    %413 = vmatprep.subr.mxu0 0.0
    %414 = vmatpush2.msra.mxu0 0.0
    %415 = vmatprep.subr.mxu0 0.0
    %416 = vmatpush2.msra.mxu0 0.0
    %417 = vmatprep.subr.mxu0 0.0
    %418 = vmatpush2.msra.mxu0 0.0
    %419 = vmatprep.subr.mxu0 0.0
    %420 = vmatpush2.msra.mxu0 0.0
    %421 = vmatprep.subr.mxu0 0.0
    %422 = vmatpush2.msra.mxu0 0.0
    %423 = vmatprep.mubr.f32.mxu0 0.0
    %424 = vmatmul.mubr.f32.gmra.mxu0 %v351
    %v425 = vpop.f32.mrf.mxu0
    %v426 = vadd.f32 0.0, %v425
    %v427 = vpop.f32.mrf.mxu0
    %v428 = vadd.f32 0.0, %v427
    %429 = vdwg.mxu0
    %v434 = vcombine.low %v347, %v349
    %v436 = vunpack.c.l.s4 1966171168
    %v437 = vunpack.c.0.s8 %v436
    %v438 = vlaneseq
    %v439 = vshrl.u32 %v438, 7
    %v440 = vsub.s32 %v437, %v439
    %v441 = vrot.slane %v434, %v440
    %v443 = vunpack.c.l.s4 1966171168
    %v444 = vunpack.c.0.s8 %v443
    %v445 = vlaneseq
    %v446 = vshrl.u32 %v445, 7
    %v447 = vsub.s32 %v444, %v446
    %v448 = vrot.slane %v441, %v447
    %v449 = vcombine.low %v426, %v428
    %v451 = vunpack.c.l.s4 1966171168
    %v452 = vunpack.c.0.s8 %v451
    %v453 = vlaneseq
    %v454 = vshrl.u32 %v453, 7
    %v455 = vsub.s32 %v452, %v454
    %v456 = vrot.slane %v449, %v455
    %v458 = vunpack.c.l.s4 1966171168
    %v459 = vunpack.c.0.s8 %v458
    %v460 = vlaneseq
    %v461 = vshrl.u32 %v460, 7
    %v462 = vsub.s32 %v459, %v461
    %v463 = vrot.slane %v456, %v462
    %v466 = vlaneseq
    %vm467 = vcmp.ge.s32.totalorder %v466, 0
    %vm468 = vcmp.lt.s32.totalorder %v466, 256
    %vm469 = vmand %vm467, %vm468
    %470 = vst.msk [vmem:[#allocation2] sm:$0x3] %vm469, %v448
    %471 = vst.msk [vmem:[#allocation2 + $0x2] sm:$0x3] %vm469, %v463
    %v474 = vunpack.c.l.s4 1966171168
    %v475 = vunpack.c.0.s8 %v474
    %v476 = vlaneseq
    %v477 = vshrl.u32 %v476, 7
    %v478 = vsub.s32 %v475, %v477
    %v479 = vrot.slane %v236, %v478
    %v480 = vcombine.high %v479, %v479
    %v482 = vunpack.c.l.s4 1966171168
    %v483 = vunpack.c.0.s8 %v482
    %v484 = vlaneseq
    %v485 = vshrl.u32 %v484, 7
    %v486 = vsub.s32 %v483, %v485
    %v487 = vrot.slane %v479, %v486
    %v489 = vunpack.c.l.s4 1966171168
    %v490 = vunpack.c.0.s8 %v489
    %v491 = vlaneseq
    %v492 = vshrl.u32 %v491, 7
    %v493 = vsub.s32 %v490, %v492
    %v494 = vrot.slane %v480, %v493
    %vm497 = vcmask 32768
    %498 = vst.msk [vmem:[#allocation4] sm:$0x1] %vm497, %v487
    %499 = vst.msk [vmem:[#allocation4 + $0x1] sm:$0x1] %vm497, %v494
    // Predicated region
    $region14: #{tpu_custom_call.1} parent=1 // pred_check
      _
    $region15: #{tpu_custom_call.1} parent=1 // pred_check_branch
      %501 = sbr.rel (0) target = $region17
    $region16: #{tpu_custom_call.1} parent=1 // pred_region
      %s503 = ssub.s32 64, 64
      %504 = vsyncadd [#allocation3], %s503
      %s505 = sshll.u32 [#allocation2], 4
      %s506 = int_to_ptr.vmem [resolvable:$true] %s505
      %511 = dma.vmem_to_hbm [thread:$0]  %s506, 64, %s3, [#allocation3], 32, 32, 2
    $region17: #{tpu_custom_call.1} parent=1 // pred_fallthru
      _
    // Predicated region
    $region18: #{tpu_custom_call.1} parent=1 // pred_check
      _
    $region19: #{tpu_custom_call.1} parent=1 // pred_check_branch
      %513 = sbr.rel (0) target = $region21
    $region20: #{tpu_custom_call.1} parent=1 // pred_region
      %s515 = ssub.s32 32, 32
      %516 = vsyncadd [#allocation5], %s515
      %s517 = sshll.u32 [#allocation4], 4
      %s518 = int_to_ptr.vmem [resolvable:$true] %s517
      %523 = dma.vmem_to_hbm [thread:$0]  %s518, 32, %s4, [#allocation5], 16, 16, 1
    $region21: #{tpu_custom_call.1} parent=1 // pred_fallthru
      _
    // Predicated region
    $region22: #{tpu_custom_call.1} parent=1 // pred_check
      _
    $region23: #{tpu_custom_call.1} parent=1 // pred_check_branch
      %525 = sbr.rel (0) target = $region25
    $region24: #{tpu_custom_call.1} parent=1 // pred_region
      %526 = dma.done [#allocation3], 64
    $region25: #{tpu_custom_call.1} parent=1 // pred_fallthru
      _
    // Predicated region
    $region26: #{tpu_custom_call.1} parent=1 // pred_check
      _
    $region27: #{tpu_custom_call.1} parent=1 // pred_check_branch
      %528 = sbr.rel (0) target = $region29
    $region28: #{tpu_custom_call.1} parent=1 // pred_region
      %529 = dma.done [#allocation5], 32
    $region29: #{tpu_custom_call.1} parent=1 // pred_fallthru
      _
    %530 = vsyncpa [#allocation3], 1
    %531 = vsyncpa [#allocation5], 1

</llo_original>
